<compile_context>
chip_gen: v5e
topology: v5e:2x2
jax: 0.10.0
libtpu: 0.0.40
codegen_flags: <defaults>
</compile_context>

<pallas_src>
import functools

import jax
import jax.numpy as jnp
from jax.experimental import pallas as pl
from jax.experimental.pallas import tpu as pltpu


def _apply_power(mag2, power):
    if power == 2:
        return mag2
    if power == 1:
        # NOTE(v7x): if a bundle dump ever shows the single EUP as the saturated
        # slot at 3.2 TB/s, switch to mag2 * rsqrt(mag2) with a zero guard.
        return jnp.sqrt(mag2)
    return jnp.power(mag2, power * 0.5)


def _spectrogram_kernel(x_ref, o_ref, *, power, mono, nb_channels, nb_frames):
    # x_ref: (1, C, tb, 2F)   re/im interleaved on the lane axis.
    # o_ref: (1, tb, F) if mono else (1, C, tb, F); frame axis in the order
    #        [0, H, 1, H+1, ...] with H = ceil(F/2) (undone in the wrapper).
    F = nb_frames
    two_f = 2 * F
    half = (F + 1) // 2
    shift_pair = two_f - 1                        # roll by -1: lane 2f gets lane 2f+1
    shift_half = (two_f + 1 - 2 * half) % two_f   # bring frame H+m onto lane 2m+1
    tb = x_ref.shape[2]

    # Hoisted outside the channel loop (JAX does not CSE broadcasts).
    lane = jax.lax.broadcasted_iota(jnp.int32, (tb, F), 1)
    even = (lane % 2) == 0

    def mag_pow(c):
        x = x_ref[0, c].astype(jnp.float32)                   # (tb, 2F)
        x2 = x * x
        y = x2 + pltpu.roll(x2, shift=shift_pair, axis=1)     # |z_f|^2 at lane 2f
        z = pltpu.roll(y, shift=shift_half, axis=1)           # |z_{f+H}|^2 at lane 2f+1
        dense = jnp.where(even, y[:, :F], z[:, :F])           # (tb, F), frames interleaved
        return _apply_power(dense, power)

    if mono:
        acc = mag_pow(0)
        for c in range(1, nb_channels):   # tiny static loop -> one fused expression
            acc = acc + mag_pow(c)
        o_ref[0] = (acc * (1.0 / nb_channels)).astype(o_ref.dtype)
    else:
        for c in range(nb_channels):
            o_ref[0, c] = mag_pow(c).astype(o_ref.dtype)


def _vmem_limit_and_budget():
    """Scoped-VMEM limit + per-grid-step byte budget, derived from the chip."""
    try:
        phys = int(pltpu.get_tpu_info().vmem_capacity_bytes)
    except Exception:            # unknown chip / emulation: assume the smallest (v7x)
        phys = 64 << 20
    vmem_limit = min(phys // 2, 64 << 20)   # 64 MiB on v5e/v6e, 32 MiB on v7x
    # Double-buffered in+out blocks stay at ~2x this budget, leaving ~30% of the
    # limit for Mosaic internal scratch / elementwise intermediates.
    step_budget = int(vmem_limit * 0.35)
    return vmem_limit, step_budget


def _pick_rows_per_block(nb_bins, C, out_c, F, itemsize, step_budget_bytes, S,
                         min_total_steps=4):
    """Frequency-bin rows per grid step.

    The op is purely row-elementwise, so rows only need 8-alignment (16 for
    sub-32-bit dtypes) or full extent.  Sized so the (input + output) block per
    step fits the byte budget, while keeping >= min_total_steps total grid
    steps so v7x's two TensorCores both get pipelined work."""
    align = 8 if itemsize >= 4 else 16
    if nb_bins <= align:
        return int(nb_bins)                               # full extent: always legal
    per_row = (2 * C + out_c) * F * itemsize              # in + out bytes per bin row
    tb = max(align, step_budget_bytes // per_row)
    min_bin_blocks = max(1, -(-min_total_steps // S))
    tb = min(tb, -(-nb_bins // min_bin_blocks))
    tb = max(align, (tb // align) * align)
    return int(min(tb, nb_bins))


def spectrogram(stft_f, power=1, mono=True):
    """stft_f: (nb_samples, nb_channels, nb_bins, nb_frames, 2)
    returns:   (nb_frames, nb_samples, 1 if mono else nb_channels, nb_bins)"""
    S, C, B, F, two = stft_f.shape
    assert two == 2, "last dim must hold (re, im)"
    out_c = 1 if mono else C
    dtype = stft_f.dtype
    itemsize = jnp.dtype(dtype).itemsize

    # Free reshape (no data movement): (S, C, B, F, 2) -> (S, C, B, 2F).
    x = stft_f.reshape(S, C, B, 2 * F)

    vmem_limit, step_budget = _vmem_limit_and_budget()
    tb = _pick_rows_per_block(B, C, out_c, F, itemsize, step_budget, S)
    grid = (S, pl.cdiv(B, tb))

    kernel = functools.partial(_spectrogram_kernel, power=power, mono=mono,
                               nb_channels=C, nb_frames=F)

    if mono:
        out_shape = jax.ShapeDtypeStruct((S, B, F), dtype)
        out_spec = pl.BlockSpec((1, tb, F), lambda s, i: (s, i, 0))
    else:
        out_shape = jax.ShapeDtypeStruct((S, C, B, F), dtype)
        out_spec = pl.BlockSpec((1, C, tb, F), lambda s, i: (s, 0, i, 0))

    out_perm = pl.pallas_call(
        kernel,
        out_shape=out_shape,
        grid_spec=pltpu.PrefetchScalarGridSpec(
            num_scalar_prefetch=0,
            grid=grid,
            in_specs=[pl.BlockSpec((1, C, tb, 2 * F), lambda s, i: (s, 0, i, 0))],
            out_specs=out_spec,
        ),
        compiler_params=pltpu.CompilerParams(
            dimension_semantics=("parallel", "parallel"),
            vmem_limit_bytes=vmem_limit,
        ),
    )(x)

    # Undo the in-kernel frame interleave ([0, H, 1, H+1, ...] -> [0, 1, ...])
    # fused with the required permutation to (F, S, out_c, B).  This is one XLA
    # pass over the OUTPUT only (2C/out_c smaller than the input).
    frames = jnp.concatenate([out_perm[..., 0::2], out_perm[..., 1::2]], axis=-1)
    if mono:
        return jnp.transpose(frames, (2, 0, 1))[:, :, None, :]
    return jnp.transpose(frames, (3, 0, 1, 2))


def _reference(stft_f, power=1, mono=True):
    # pure-JAX mirror of the PyTorch forward
    x = jnp.swapaxes(stft_f, 2, 3)                         # (S, C, F, B, 2)
    x = jnp.power(jnp.sum(x ** 2, axis=-1), power / 2.0)   # (S, C, F, B)
    if mono:
        x = jnp.mean(x, axis=1, keepdims=True)             # (S, 1, F, B)
    return jnp.transpose(x, (2, 0, 1, 3))                  # (F, S, out_c, B)


if __name__ == "__main__":
    key = jax.random.PRNGKey(0)
    nb_samples, nb_channels, nb_bins, nb_frames = 2, 2, 128, 8
    stft_f = jax.random.normal(
        key, (nb_samples, nb_channels, nb_bins, nb_frames, 2), dtype=jnp.float32)

    # mono magnitude spectrogram (module defaults: power=1, mono=True)
    out = jax.block_until_ready(spectrogram(stft_f, power=1, mono=True))
    ref = jax.block_until_ready(_reference(stft_f, power=1, mono=True))
    assert out.shape == (nb_frames, nb_samples, 1, nb_bins), out.shape
    assert jnp.allclose(out, ref, atol=1e-5, rtol=1e-5), "mono mismatch vs reference"

    # stereo power spectrogram (exercise the non-mono / power=2 path too)
    out2 = jax.block_until_ready(spectrogram(stft_f, power=2, mono=False))
    ref2 = jax.block_until_ready(_reference(stft_f, power=2, mono=False))
    assert out2.shape == (nb_frames, nb_samples, nb_channels, nb_bins), out2.shape
    assert jnp.allclose(out2, ref2, atol=1e-5, rtol=1e-5), "stereo mismatch vs reference"

    # odd frame count + non-8-aligned bin count (exercises the odd-F interleave
    # and the masked partial last bin block)
    key3 = jax.random.PRNGKey(0)
    stft_f3 = jax.random.normal(key3, (1, 2, 100, 5, 2), dtype=jnp.float32)
    out3 = jax.block_until_ready(spectrogram(stft_f3, power=1, mono=True))
    ref3 = jax.block_until_ready(_reference(stft_f3, power=1, mono=True))
    assert out3.shape == (5, 1, 1, 100), out3.shape
    assert jnp.allclose(out3, ref3, atol=1e-5, rtol=1e-5), "odd-F mismatch vs reference"

    print("KERNEL_OK")
</pallas_src>

<mosaic_0001>
module attributes {stable_mosaic.version = 11 : i64} {
  func.func @_spectrogram_kernel(%arg0: i32, %arg1: i32, %arg2: memref<1x2x64x16xf32, #tpu.memory_space<vmem>>, %arg3: memref<1x64x8xf32, #tpu.memory_space<vmem>>) attributes {dimension_semantics = [#tpu.dimension_semantics<parallel>, #tpu.dimension_semantics<parallel>], iteration_bounds = array<i64: 2, 2>, scalar_prefetch = 0 : i64, scratch_operands = 0 : i64, tpu.core_type = #tpu.core_type<tc>, window_params = [{transform_indices = @transform_0, window_bounds = array<i64: 1, 2, 64, 16>}, {transform_indices = @transform_1, window_bounds = array<i64: 1, 64, 8>}]} {
    %0 = tpu.iota {dimensions = array<i32: 1>} : vector<64x8xi32>
    %c2_i32 = arith.constant 2 : i32
    %c0_i32 = arith.constant 0 : i32
    %1 = arith.cmpi eq, %c2_i32, %c0_i32 : i32
    %c1_i32 = arith.constant 1 : i32
    %2 = arith.select %1, %c1_i32, %c2_i32 : i32
    %3 = vector.broadcast %2 : i32 to vector<64x8xi32>
    %4 = arith.remsi %0, %3 : vector<64x8xi32>
    %c0_i32_0 = arith.constant 0 : i32
    %5 = vector.broadcast %c0_i32_0 : i32 to vector<64x8xi32>
    %6 = arith.cmpi ne, %4, %5 : vector<64x8xi32>
    %c0_i32_1 = arith.constant 0 : i32
    %7 = vector.broadcast %c0_i32_1 : i32 to vector<64x8xi32>
    %8 = arith.cmpi slt, %4, %7 : vector<64x8xi32>
    %c0_i32_2 = arith.constant 0 : i32
    %9 = arith.cmpi slt, %2, %c0_i32_2 : i32
    %10 = vector.broadcast %9 : i1 to vector<64x8xi1>
    %11 = vector.broadcast %10 : vector<64x8xi1> to vector<64x8xi1>
    %12 = arith.xori %8, %11 : vector<64x8xi1>
    %13 = arith.andi %12, %6 : vector<64x8xi1>
    %14 = vector.broadcast %2 : i32 to vector<64x8xi32>
    %15 = arith.addi %4, %14 : vector<64x8xi32>
    %16 = arith.select %13, %15, %4 : vector<64x8xi1>, vector<64x8xi32>
    %c0_i32_3 = arith.constant 0 : i32
    %17 = vector.broadcast %c0_i32_3 : i32 to vector<64x8xi32>
    %18 = arith.cmpi eq, %16, %17 : vector<64x8xi32>
    %c0 = arith.constant 0 : index
    %c0_4 = arith.constant 0 : index
    %c0_5 = arith.constant 0 : index
    %c0_6 = arith.constant 0 : index
    %19 = vector.load %arg2[%c0, %c0_4, %c0_5, %c0_6] : memref<1x2x64x16xf32, #tpu.memory_space<vmem>>, vector<1x1x64x16xf32>
    %20 = vector.shape_cast %19 : vector<1x1x64x16xf32> to vector<64x16xf32>
    %21 = arith.mulf %20, %20 : vector<64x16xf32>
    %c15_i32 = arith.constant 15 : i32
    %22 = tpu.dynamic_rotate %21 by %c15_i32 dim 1 : vector<64x16xf32>, i32 -> vector<64x16xf32>
    %23 = arith.addf %21, %22 : vector<64x16xf32>
    %c9_i32 = arith.constant 9 : i32
    %24 = tpu.dynamic_rotate %23 by %c9_i32 dim 1 : vector<64x16xf32>, i32 -> vector<64x16xf32>
    %25 = vector.extract_strided_slice %23 {offsets = [0, 0], sizes = [64, 8], strides = [1, 1]} : vector<64x16xf32> to vector<64x8xf32>
    %26 = vector.extract_strided_slice %24 {offsets = [0, 0], sizes = [64, 8], strides = [1, 1]} : vector<64x16xf32> to vector<64x8xf32>
    %27 = arith.select %18, %25, %26 : vector<64x8xi1>, vector<64x8xf32>
    %28 = math.sqrt %27 : vector<64x8xf32>
    %c0_7 = arith.constant 0 : index
    %c1 = arith.constant 1 : index
    %c0_8 = arith.constant 0 : index
    %c0_9 = arith.constant 0 : index
    %29 = vector.load %arg2[%c0_7, %c1, %c0_8, %c0_9] : memref<1x2x64x16xf32, #tpu.memory_space<vmem>>, vector<1x1x64x16xf32>
    %30 = vector.shape_cast %29 : vector<1x1x64x16xf32> to vector<64x16xf32>
    %31 = arith.mulf %30, %30 : vector<64x16xf32>
    %c15_i32_10 = arith.constant 15 : i32
    %32 = tpu.dynamic_rotate %31 by %c15_i32_10 dim 1 : vector<64x16xf32>, i32 -> vector<64x16xf32>
    %33 = arith.addf %31, %32 : vector<64x16xf32>
    %c9_i32_11 = arith.constant 9 : i32
    %34 = tpu.dynamic_rotate %33 by %c9_i32_11 dim 1 : vector<64x16xf32>, i32 -> vector<64x16xf32>
    %35 = vector.extract_strided_slice %33 {offsets = [0, 0], sizes = [64, 8], strides = [1, 1]} : vector<64x16xf32> to vector<64x8xf32>
    %36 = vector.extract_strided_slice %34 {offsets = [0, 0], sizes = [64, 8], strides = [1, 1]} : vector<64x16xf32> to vector<64x8xf32>
    %37 = arith.select %18, %35, %36 : vector<64x8xi1>, vector<64x8xf32>
    %38 = math.sqrt %37 : vector<64x8xf32>
    %39 = arith.addf %28, %38 : vector<64x8xf32>
    %cst = arith.constant 5.000000e-01 : f32
    %40 = vector.broadcast %cst : f32 to vector<64x8xf32>
    %41 = arith.mulf %39, %40 : vector<64x8xf32>
    %c0_12 = arith.constant 0 : index
    %c0_13 = arith.constant 0 : index
    %c0_14 = arith.constant 0 : index
    %42 = vector.load %arg3[%c0_12, %c0_13, %c0_14] : memref<1x64x8xf32, #tpu.memory_space<vmem>>, vector<1x64x8xf32>
    %43 = vector.shape_cast %42 : vector<1x64x8xf32> to vector<64x8xf32>
    %44 = vector.shape_cast %41 : vector<64x8xf32> to vector<1x64x8xf32>
    tpu.vector_store %arg3[%c0_12, %c0_13, %c0_14], %44 {strides = array<i32>} : memref<1x64x8xf32, #tpu.memory_space<vmem>>, vector<1x64x8xf32>,
    return
  }
  func.func @transform_0(%arg0: i32, %arg1: i32) -> (i32, i32, i32, i32) {
    %c0_i32 = arith.constant 0 : i32
    %c0_i32_0 = arith.constant 0 : i32
    %c0_i32_1 = arith.constant 0 : i32
    return %arg0, %c0_i32, %arg1, %c0_i32_0 : i32, i32, i32, i32
  }
  func.func @transform_1(%arg0: i32, %arg1: i32) -> (i32, i32, i32) {
    %c0_i32 = arith.constant 0 : i32
    %c0_i32_0 = arith.constant 0 : i32
    return %arg0, %arg1, %c0_i32 : i32, i32, i32
  }
}

</mosaic_0001>

<llo_original>
// kernel: tpu_custom_call.1
$region0: #{tpu_custom_call.1}
  #allocation0 [shape = 'u32[]', space=smem, size = 0x4, offset = 0x4, fixed_abs, tag = 'smem constant byte address 0x4 - core index']
  #allocation1 [shape = 'u32[72,128]{1,0:T(1,128)}', space=vmem, size = 0x9000, scoped, tag = 'internal scratch']
  %s0 = inlined_call_operand.vmem [shape: f32[2,2,128,16], index: 0, kind: input, shape index: {}]
  %s1 = inlined_call_operand.vmem [shape: f32[2,128,8], index: 1, kind: output, shape index: {}]
  %s2 = sld [smem:[#allocation0]]
  $region75: #{tpu_custom_call.1} parent=0
    _
  %s4 = ssub.s32 1, %s2
  %s5 = scalar_select 0, %s4, %s2
  $region1: #{tpu_custom_call.1} parent=0
    #allocation2 [shape = 'u8[131072]{0}', space=vmem, size = 0x20000, scoped, tag = 'input window, operand 0']
    loop: start=0, step=1, limit=6
    $region2: #{tpu_custom_call.1} parent=1 // loop_pre_header
      _
    $region3: #{tpu_custom_call.1} parent=1 // loop_header
      %s7 = sphi 0, %s11
      %p8 = scmp.ge.s32.totalorder %s7, 6
      %s14 = sphi 0, %s26
      %s15 = sphi 0, %s22
      %s16 = sphi 0, %s14
      %s17 = sphi 0, %s15
      %s18 = sphi 0, %s16
      %s19 = sphi 0, %s17
      %s31 = sphi 0, %s33
      %s34 = sphi 0, %s31
      %s35 = sphi 0, %s34
      %s51 = sphi 0, %s35
      %s59 = sphi 0, %s61
      %s62 = sphi 0, %s59
      %s63 = sphi 0, %s62
      %s79 = sphi 0, %s63
    $region4: #{tpu_custom_call.1} parent=1 // loop_header_branch
      %10 = sbr.rel (%p8) target = $region8
    $region5: #{tpu_custom_call.1} parent=1 // loop_body
      %s12 = ssub.s32 %s7, 1
      %s13 = ssub.s32 %s7, 2
      %s20 = sadd.s32 1, %s15
      %p21 = scmp.ge.s32.totalorder %s20, 2
      %s22 = scalar_select %p21, 0, %s20
      %s23 = sadd.s32 1, %s14
      %s24 = scalar_select %p21, %s23, %s14
      %p25 = scmp.ge.s32.totalorder %s24, 2
      %s26 = scalar_select %p25, 0, %s24
      %s27 = ssub.s32 %s14, %s26
      %s28 = ssub.s32 %s15, %s22
      %s29 = sor.u32 %s27, %s28
      %p30 = scmp.eq.s32.totalorder %s29, 0
      %s32 = sadd.s32 %s31, 1
      %s33 = scalar_select %p30, %s31, %s32
      %p36 = pneg %p30
      %p37 = scmp.eq.s32.totalorder %s7, 3
      %p38 = por %p36, %p37
      %p39 = scmp.ne.s32.totalorder %s31, %s34
      %p40 = scmp.eq.s32.totalorder %s7, 0
      %p41 = por %p39, %p40
      %p42 = scmp.ne.s32.totalorder %s31, %s34
      %p43 = scmp.eq.s32.totalorder %s12, 3
      %p44 = por %p42, %p43
      %p45 = scmp.ne.s32.totalorder %s34, %s35
      %p46 = scmp.eq.s32.totalorder %s12, 0
      %p47 = por %p45, %p46
      %p48 = scmp.ne.s32.totalorder %s34, %s35
      %p49 = scmp.eq.s32.totalorder %s13, 3
      %p50 = por %p48, %p49
      %p52 = scmp.ne.s32.totalorder %s35, %s51
      %p53 = scmp.eq.s32.totalorder %s13, 0
      %p54 = por %p52, %p53
      %s55 = ssub.s32 %s14, %s26
      %s56 = ssub.s32 %s15, %s22
      %s57 = sor.u32 %s55, %s56
      %p58 = scmp.eq.s32.totalorder %s57, 0
      %s60 = sadd.s32 %s59, 1
      %s61 = scalar_select %p58, %s59, %s60
      %p64 = pneg %p58
      %p65 = scmp.eq.s32.totalorder %s7, 3
      %p66 = por %p64, %p65
      %p67 = scmp.ne.s32.totalorder %s59, %s62
      %p68 = scmp.eq.s32.totalorder %s7, 0
      %p69 = por %p67, %p68
      %p70 = scmp.ne.s32.totalorder %s59, %s62
      %p71 = scmp.eq.s32.totalorder %s12, 3
      %p72 = por %p70, %p71
      %p73 = scmp.ne.s32.totalorder %s62, %s63
      %p74 = scmp.eq.s32.totalorder %s12, 0
      %p75 = por %p73, %p74
      %p76 = scmp.ne.s32.totalorder %s62, %s63
      %p77 = scmp.eq.s32.totalorder %s13, 3
      %p78 = por %p76, %p77
      %p80 = scmp.ne.s32.totalorder %s63, %s79
      %p81 = scmp.eq.s32.totalorder %s13, 0
      %p82 = por %p80, %p81
      %p83 = scmp.le.s32.totalorder 1, %s7
      %p84 = scmp.lt.s32.totalorder %s7, 5
      %p85 = pnand %p83, %p84
      %p86 = pneg %p85
      // Predicated region
      $region9: #{tpu_custom_call.1} parent=5 // pred_check
        _
      $region10: #{tpu_custom_call.1} parent=5 // pred_check_branch
        %88 = sbr.rel (%p85) target = $region12
      $region11: #{tpu_custom_call.1} parent=5 // pred_region
        %s89 = ssub.s32 %s7, 1
      $region12: #{tpu_custom_call.1} parent=5 // pred_fallthru
        _
      %p90 = scmp.lt.s32.totalorder %s7, 4
      // Predicated region
      $region13: #{tpu_custom_call.1} parent=5 // pred_check
        %p91 = pneg %p90
      $region14: #{tpu_custom_call.1} parent=5 // pred_check_branch
        %93 = sbr.rel (%p91) target = $region16
      $region15: #{tpu_custom_call.1} parent=5 // pred_region
        // Predicated region
        $region17: #{tpu_custom_call.1} parent=15 // pred_check
          %p94 = pneg %p41
        $region18: #{tpu_custom_call.1} parent=15 // pred_check_branch
          %96 = sbr.rel (%p94) target = $region20
        $region19: #{tpu_custom_call.1} parent=15 // pred_region
          %s97 = sand.u32 %s31, 1
          %s98 = sand.u32 %s31, 1
          %s99 = smul.addr %s98, 128
          %s100 = scalar_lea.vmem [#allocation2], %s99
          %s101 = smul.u32 8, %s15
          %s102 = smul.addr %s14, 32
          %s103 = sadd.s32 %s101, %s102
          %s104 = smul.addr %s103, 8
          %s105 = scalar_lea.vmem %s0, %s104
          // Predicated region
          $region21: #{tpu_custom_call.1} parent=19 // pred_check
            _
          $region22: #{tpu_custom_call.1} parent=19 // pred_check_branch
            %107 = sbr.rel (0) target = $region24
          $region23: #{tpu_custom_call.1} parent=19 // pred_region
            // Predicated region
            $region25: #{tpu_custom_call.1} parent=23 // pred_check
              _
            $region26: #{tpu_custom_call.1} parent=23 // pred_check_branch
              %109 = sbr.rel (0) target = $region28
            $region27: #{tpu_custom_call.1} parent=23 // pred_region
              // Predicated region
              $region40: #{tpu_custom_call.1} parent=27 // pred_check
                _
              $region41: #{tpu_custom_call.1} parent=27 // pred_check_branch
                %155 = sbr.rel (0) target = $region43
              $region42: #{tpu_custom_call.1} parent=27 // pred_region
                loop: start=0, step=1, limit=1
                $region44: #{tpu_custom_call.1} parent=42 // loop_pre_header
                  _
                $region45: #{tpu_custom_call.1} parent=42 // loop_header
                  %s157 = sphi 0, %s161
                  %p158 = scmp.ge.s32.totalorder %s157, 1
                  %s162 = sphi %s105, %s105
                  %s163 = sphi %s100, %s100
                $region46: #{tpu_custom_call.1} parent=42 // loop_header_branch
                  %160 = sbr.rel (%p158) target = $region50
                $region47: #{tpu_custom_call.1} parent=42 // loop_body
                  %v164 = vld [vmem:[%s162] sm:$0xff]
                  %165 = vst [vmem:[%s163] sm:$0xff] %v164
                  %v166 = vld [vmem:[%s162 + $0x8] sm:$0xff]
                  %167 = vst [vmem:[%s163 + $0x8] sm:$0xff] %v166
                  %v168 = vld [vmem:[%s162 + $0x10] sm:$0xff]
                  %169 = vst [vmem:[%s163 + $0x10] sm:$0xff] %v168
                  %v170 = vld [vmem:[%s162 + $0x18] sm:$0xff]
                  %171 = vst [vmem:[%s163 + $0x18] sm:$0xff] %v170
                  %v172 = vld [vmem:[%s162 + $0x20] sm:$0xff]
                  %173 = vst [vmem:[%s163 + $0x20] sm:$0xff] %v172
                  %v174 = vld [vmem:[%s162 + $0x28] sm:$0xff]
                  %175 = vst [vmem:[%s163 + $0x28] sm:$0xff] %v174
                  %v176 = vld [vmem:[%s162 + $0x30] sm:$0xff]
                  %177 = vst [vmem:[%s163 + $0x30] sm:$0xff] %v176
                  %v178 = vld [vmem:[%s162 + $0x38] sm:$0xff]
                  %179 = vst [vmem:[%s163 + $0x38] sm:$0xff] %v178
                  %v180 = vld [vmem:[%s162 + $0x80] sm:$0xff]
                  %181 = vst [vmem:[%s163 + $0x40] sm:$0xff] %v180
                  %v182 = vld [vmem:[%s162 + $0x88] sm:$0xff]
                  %183 = vst [vmem:[%s163 + $0x48] sm:$0xff] %v182
                  %v184 = vld [vmem:[%s162 + $0x90] sm:$0xff]
                  %185 = vst [vmem:[%s163 + $0x50] sm:$0xff] %v184
                  %v186 = vld [vmem:[%s162 + $0x98] sm:$0xff]
                  %187 = vst [vmem:[%s163 + $0x58] sm:$0xff] %v186
                  %v188 = vld [vmem:[%s162 + $0xa0] sm:$0xff]
                  %189 = vst [vmem:[%s163 + $0x60] sm:$0xff] %v188
                  %v190 = vld [vmem:[%s162 + $0xa8] sm:$0xff]
                  %191 = vst [vmem:[%s163 + $0x68] sm:$0xff] %v190
                  %v192 = vld [vmem:[%s162 + $0xb0] sm:$0xff]
                  %193 = vst [vmem:[%s163 + $0x70] sm:$0xff] %v192
                  %v194 = vld [vmem:[%s162 + $0xb8] sm:$0xff]
                  %195 = vst [vmem:[%s163 + $0x78] sm:$0xff] %v194
                $region48: #{tpu_custom_call.1} parent=42 // loop_footer
                  %s161 = sadd.s32 1, %s157
                $region49: #{tpu_custom_call.1} parent=42 // loop_footer_branch
                  %156 = sbr.rel target = $region45
                $region50: #{tpu_custom_call.1} parent=42 // loop_exit
                  _
              $region43: #{tpu_custom_call.1} parent=27 // pred_fallthru
                _
              // Predicated region
              $region51: #{tpu_custom_call.1} parent=27 // pred_check
                _
              $region52: #{tpu_custom_call.1} parent=27 // pred_check_branch
                %197 = sbr.rel target = $region54
              $region53: #{tpu_custom_call.1} parent=27 // pred_region
                _
              $region54: #{tpu_custom_call.1} parent=27 // pred_fallthru
                _
            $region28: #{tpu_custom_call.1} parent=23 // pred_fallthru
              _
            // Predicated region
            $region29: #{tpu_custom_call.1} parent=23 // pred_check
              _
            $region30: #{tpu_custom_call.1} parent=23 // pred_check_branch
              %111 = sbr.rel target = $region32
            $region31: #{tpu_custom_call.1} parent=23 // pred_region
              %s113 = ssub.s32 256, 1
              loop: start=0, step=1, limit=1
              $region33: #{tpu_custom_call.1} parent=31 // loop_pre_header
                _
              $region34: #{tpu_custom_call.1} parent=31 // loop_header
                %s115 = sphi 0, %s119
                %p116 = scmp.ge.s32.totalorder %s115, 1
                %s120 = sphi %s105, %s105
                %s121 = sphi %s100, %s100
              $region35: #{tpu_custom_call.1} parent=31 // loop_header_branch
                %118 = sbr.rel (%p116) target = $region39
              $region36: #{tpu_custom_call.1} parent=31 // loop_body
                %v122 = vld [vmem:[%s120] sm:%s113]
                %123 = vst [vmem:[%s121] sm:%s113] %v122
                %v124 = vld [vmem:[%s120 + $0x8] sm:%s113]
                %125 = vst [vmem:[%s121 + $0x8] sm:%s113] %v124
                %v126 = vld [vmem:[%s120 + $0x10] sm:%s113]
                %127 = vst [vmem:[%s121 + $0x10] sm:%s113] %v126
                %v128 = vld [vmem:[%s120 + $0x18] sm:%s113]
                %129 = vst [vmem:[%s121 + $0x18] sm:%s113] %v128
                %v130 = vld [vmem:[%s120 + $0x20] sm:%s113]
                %131 = vst [vmem:[%s121 + $0x20] sm:%s113] %v130
                %v132 = vld [vmem:[%s120 + $0x28] sm:%s113]
                %133 = vst [vmem:[%s121 + $0x28] sm:%s113] %v132
                %v134 = vld [vmem:[%s120 + $0x30] sm:%s113]
                %135 = vst [vmem:[%s121 + $0x30] sm:%s113] %v134
                %v136 = vld [vmem:[%s120 + $0x38] sm:%s113]
                %137 = vst [vmem:[%s121 + $0x38] sm:%s113] %v136
                %v138 = vld [vmem:[%s120 + $0x80] sm:%s113]
                %139 = vst [vmem:[%s121 + $0x40] sm:%s113] %v138
                %v140 = vld [vmem:[%s120 + $0x88] sm:%s113]
                %141 = vst [vmem:[%s121 + $0x48] sm:%s113] %v140
                %v142 = vld [vmem:[%s120 + $0x90] sm:%s113]
                %143 = vst [vmem:[%s121 + $0x50] sm:%s113] %v142
                %v144 = vld [vmem:[%s120 + $0x98] sm:%s113]
                %145 = vst [vmem:[%s121 + $0x58] sm:%s113] %v144
                %v146 = vld [vmem:[%s120 + $0xa0] sm:%s113]
                %147 = vst [vmem:[%s121 + $0x60] sm:%s113] %v146
                %v148 = vld [vmem:[%s120 + $0xa8] sm:%s113]
                %149 = vst [vmem:[%s121 + $0x68] sm:%s113] %v148
                %v150 = vld [vmem:[%s120 + $0xb0] sm:%s113]
                %151 = vst [vmem:[%s121 + $0x70] sm:%s113] %v150
                %v152 = vld [vmem:[%s120 + $0xb8] sm:%s113]
                %153 = vst [vmem:[%s121 + $0x78] sm:%s113] %v152
              $region37: #{tpu_custom_call.1} parent=31 // loop_footer
                %s119 = sadd.s32 1, %s115
              $region38: #{tpu_custom_call.1} parent=31 // loop_footer_branch
                %114 = sbr.rel target = $region34
              $region39: #{tpu_custom_call.1} parent=31 // loop_exit
                _
            $region32: #{tpu_custom_call.1} parent=23 // pred_fallthru
              _
          $region24: #{tpu_custom_call.1} parent=19 // pred_fallthru
            _
          %198 = vnop
        $region20: #{tpu_custom_call.1} parent=15 // pred_fallthru
          _
      $region16: #{tpu_custom_call.1} parent=5 // pred_fallthru
        _
      %p199 = scmp.le.s32.totalorder 1, %s7
      %p200 = scmp.lt.s32.totalorder %s7, 5
      %p201 = pnand %p199, %p200
      %p202 = pneg %p201
      // Predicated region
      $region55: #{tpu_custom_call.1} parent=5 // pred_check
        _
      $region56: #{tpu_custom_call.1} parent=5 // pred_check_branch
        %204 = sbr.rel (%p201) target = $region58
      $region57: #{tpu_custom_call.1} parent=5 // pred_region
        %s205 = ssub.s32 %s7, 1
        %s206 = sand.u32 %s34, 1
        %s207 = sand.u32 %s34, 1
        %s208 = smul.addr %s207, 128
        %s209 = scalar_lea.vmem [#allocation2], %s208
        // Predicated region
        $region59: #{tpu_custom_call.1} parent=57 // pred_check
          %p210 = pneg %p47
        $region60: #{tpu_custom_call.1} parent=57 // pred_check_branch
          %212 = sbr.rel (%p210) target = $region62
        $region61: #{tpu_custom_call.1} parent=57 // pred_region
          _
        $region62: #{tpu_custom_call.1} parent=57 // pred_fallthru
          _
        %s213 = sand.u32 %s34, 1
        %s214 = sand.u32 %s34, 1
        %s215 = smul.addr %s214, 128
        %s216 = scalar_lea.vmem [#allocation2], %s215
        %p217 = pneg %p47
        %p218 = pneg %p44
        %p219 = pneg %p75
        %p220 = pneg %p72
        %s221 = smul.u32 8, %s17
        %p222 = scmp.lt.s32.totalorder %s16, 1
        %s223 = scalar_select %p222, %s16, 1
        %p224 = scmp.lt.s32.totalorder %s221, 15
        %s225 = scalar_select %p224, %s221, 15
        %s226 = smul.addr %s223, 16
        %s227 = sadd.s32 %s225, %s226
        %s228 = smul.addr %s227, 8
        %s229 = scalar_lea.vmem %s1, %s228
        %s230 = smul.u32 8, %s17
        %s231 = smul.u32 8, %s17
        %p232 = scmp.lt.s32.totalorder %s16, 1
        %s233 = scalar_select %p232, %s16, 1
        %p234 = scmp.lt.s32.totalorder %s231, 15
        %s235 = scalar_select %p234, %s231, 15
        %s236 = smul.addr %s233, 16
        %s237 = sadd.s32 %s235, %s236
        %s238 = smul.addr %s237, 8
        %s239 = scalar_lea.vmem %s1, %s238
        %s240 = smul.u32 8, %s17
        %v241 = vlaneseq
        %v242 = vand.u32 %v241, 127
        %vm243 = vcmp.lt.s32.totalorder %v242, 0
        %v244 = vsub.s32 0, %v242
        %v245 = vsel %vm243, %v244, %v242
        %v246 = vshrl.u32 %v245, 1
        %v247 = vand.u32 %v245, 1
        %v248 = vsub.s32 0, %v247
        %v249 = vsel %vm243, %v248, %v247
        %vm250 = vcmp.ne.s32.totalorder %v249, 0
        %vm251 = vcmp.lt.s32.totalorder %v249, 0
        %vm252 = vmand %vm251, %vm250
        %v253 = vadd.s32 %v249, 2
        %v254 = vsel %vm252, %v253, %v249
        %vm255 = vcmp.eq.s32.totalorder %v254, 0
        %v256 = vld [vmem:[%s209] sm:$0xff]
        %v257 = vld [vmem:[%s209 + $0x8] sm:$0xff]
        %v258 = vld [vmem:[%s209 + $0x10] sm:$0xff]
        %v259 = vld [vmem:[%s209 + $0x18] sm:$0xff]
        %v260 = vld [vmem:[%s209 + $0x20] sm:$0xff]
        %v261 = vld [vmem:[%s209 + $0x28] sm:$0xff]
        %v262 = vld [vmem:[%s209 + $0x30] sm:$0xff]
        %v263 = vld [vmem:[%s209 + $0x38] sm:$0xff]
        %v264 = vmul.f32 %v256, %v256
        %v265 = vmul.f32 %v257, %v257
        %v266 = vmul.f32 %v258, %v258
        %v267 = vmul.f32 %v259, %v259
        %v268 = vmul.f32 %v260, %v260
        %v269 = vmul.f32 %v261, %v261
        %v270 = vmul.f32 %v262, %v262
        %v271 = vmul.f32 %v263, %v263
        %vm272 = vcmask 1047680
        %273 = vrot.lane.b32.xlu0 %v264, 16
        %v274 = vpop.permute.xlu0 %273
        %v275 = vsel %vm272, %v274, %v264
        %276 = vrot.lane.b32.xlu0 %v265, 16
        %v277 = vpop.permute.xlu0 %276
        %v278 = vsel %vm272, %v277, %v265
        %279 = vrot.lane.b32.xlu0 %v266, 16
        %v280 = vpop.permute.xlu0 %279
        %v281 = vsel %vm272, %v280, %v266
        %282 = vrot.lane.b32.xlu0 %v267, 16
        %v283 = vpop.permute.xlu0 %282
        %v284 = vsel %vm272, %v283, %v267
        %285 = vrot.lane.b32.xlu0 %v268, 16
        %v286 = vpop.permute.xlu0 %285
        %v287 = vsel %vm272, %v286, %v268
        %288 = vrot.lane.b32.xlu0 %v269, 16
        %v289 = vpop.permute.xlu0 %288
        %v290 = vsel %vm272, %v289, %v269
        %291 = vrot.lane.b32.xlu0 %v270, 16
        %v292 = vpop.permute.xlu0 %291
        %v293 = vsel %vm272, %v292, %v270
        %294 = vrot.lane.b32.xlu0 %v271, 16
        %v295 = vpop.permute.xlu0 %294
        %v296 = vsel %vm272, %v295, %v271
        %297 = vrot.lane.b32.xlu0 %v275, 16
        %v298 = vpop.permute.xlu0 %297
        %299 = vrot.lane.b32.xlu0 %v278, 16
        %v300 = vpop.permute.xlu0 %299
        %301 = vrot.lane.b32.xlu0 %v281, 16
        %v302 = vpop.permute.xlu0 %301
        %303 = vrot.lane.b32.xlu0 %v284, 16
        %v304 = vpop.permute.xlu0 %303
        %305 = vrot.lane.b32.xlu0 %v287, 16
        %v306 = vpop.permute.xlu0 %305
        %307 = vrot.lane.b32.xlu0 %v290, 16
        %v308 = vpop.permute.xlu0 %307
        %309 = vrot.lane.b32.xlu0 %v293, 16
        %v310 = vpop.permute.xlu0 %309
        %311 = vrot.lane.b32.xlu0 %v296, 16
        %v312 = vpop.permute.xlu0 %311
        %v313 = vsel %vm272, %v298, %v264
        %v314 = vsel %vm272, %v300, %v265
        %v315 = vsel %vm272, %v302, %v266
        %v316 = vsel %vm272, %v304, %v267
        %v317 = vsel %vm272, %v306, %v268
        %v318 = vsel %vm272, %v308, %v269
        %v319 = vsel %vm272, %v310, %v270
        %v320 = vsel %vm272, %v312, %v271
        %329 = vrot.lane.b32.xlu0 %v313, 127
        %v330 = vpop.permute.xlu0 %329
        %331 = vrot.lane.b32.xlu0 %v314, 127
        %v332 = vpop.permute.xlu0 %331
        %333 = vrot.lane.b32.xlu0 %v315, 127
        %v334 = vpop.permute.xlu0 %333
        %335 = vrot.lane.b32.xlu0 %v316, 127
        %v336 = vpop.permute.xlu0 %335
        %337 = vrot.lane.b32.xlu0 %v317, 127
        %v338 = vpop.permute.xlu0 %337
        %339 = vrot.lane.b32.xlu0 %v318, 127
        %v340 = vpop.permute.xlu0 %339
        %341 = vrot.lane.b32.xlu0 %v319, 127
        %v342 = vpop.permute.xlu0 %341
        %343 = vrot.lane.b32.xlu0 %v320, 127
        %v344 = vpop.permute.xlu0 %343
        %v353 = vadd.f32 %v264, %v330
        %v354 = vadd.f32 %v265, %v332
        %v355 = vadd.f32 %v266, %v334
        %v356 = vadd.f32 %v267, %v336
        %v357 = vadd.f32 %v268, %v338
        %v358 = vadd.f32 %v269, %v340
        %v359 = vadd.f32 %v270, %v342
        %v360 = vadd.f32 %v271, %v344
        %361 = vrot.lane.b32.xlu0 %v353, 16
        %v362 = vpop.permute.xlu0 %361
        %v363 = vsel %vm272, %v362, %v353
        %364 = vrot.lane.b32.xlu0 %v354, 16
        %v365 = vpop.permute.xlu0 %364
        %v366 = vsel %vm272, %v365, %v354
        %367 = vrot.lane.b32.xlu0 %v355, 16
        %v368 = vpop.permute.xlu0 %367
        %v369 = vsel %vm272, %v368, %v355
        %370 = vrot.lane.b32.xlu0 %v356, 16
        %v371 = vpop.permute.xlu0 %370
        %v372 = vsel %vm272, %v371, %v356
        %373 = vrot.lane.b32.xlu0 %v357, 16
        %v374 = vpop.permute.xlu0 %373
        %v375 = vsel %vm272, %v374, %v357
        %376 = vrot.lane.b32.xlu0 %v358, 16
        %v377 = vpop.permute.xlu0 %376
        %v378 = vsel %vm272, %v377, %v358
        %379 = vrot.lane.b32.xlu0 %v359, 16
        %v380 = vpop.permute.xlu0 %379
        %v381 = vsel %vm272, %v380, %v359
        %382 = vrot.lane.b32.xlu0 %v360, 16
        %v383 = vpop.permute.xlu0 %382
        %v384 = vsel %vm272, %v383, %v360
        %385 = vrot.lane.b32.xlu0 %v363, 16
        %v386 = vpop.permute.xlu0 %385
        %387 = vrot.lane.b32.xlu0 %v366, 16
        %v388 = vpop.permute.xlu0 %387
        %389 = vrot.lane.b32.xlu0 %v369, 16
        %v390 = vpop.permute.xlu0 %389
        %391 = vrot.lane.b32.xlu0 %v372, 16
        %v392 = vpop.permute.xlu0 %391
        %393 = vrot.lane.b32.xlu0 %v375, 16
        %v394 = vpop.permute.xlu0 %393
        %395 = vrot.lane.b32.xlu0 %v378, 16
        %v396 = vpop.permute.xlu0 %395
        %397 = vrot.lane.b32.xlu0 %v381, 16
        %v398 = vpop.permute.xlu0 %397
        %399 = vrot.lane.b32.xlu0 %v384, 16
        %v400 = vpop.permute.xlu0 %399
        %v401 = vsel %vm272, %v386, %v353
        %v402 = vsel %vm272, %v388, %v354
        %v403 = vsel %vm272, %v390, %v355
        %v404 = vsel %vm272, %v392, %v356
        %v405 = vsel %vm272, %v394, %v357
        %v406 = vsel %vm272, %v396, %v358
        %v407 = vsel %vm272, %v398, %v359
        %v408 = vsel %vm272, %v400, %v360
        %417 = vrot.lane.b32.xlu0 %v401, 121
        %v418 = vpop.permute.xlu0 %417
        %419 = vrot.lane.b32.xlu0 %v402, 121
        %v420 = vpop.permute.xlu0 %419
        %421 = vrot.lane.b32.xlu0 %v403, 121
        %v422 = vpop.permute.xlu0 %421
        %423 = vrot.lane.b32.xlu0 %v404, 121
        %v424 = vpop.permute.xlu0 %423
        %425 = vrot.lane.b32.xlu0 %v405, 121
        %v426 = vpop.permute.xlu0 %425
        %427 = vrot.lane.b32.xlu0 %v406, 121
        %v428 = vpop.permute.xlu0 %427
        %429 = vrot.lane.b32.xlu0 %v407, 121
        %v430 = vpop.permute.xlu0 %429
        %431 = vrot.lane.b32.xlu0 %v408, 121
        %v432 = vpop.permute.xlu0 %431
        %v441 = vsel %vm255, %v353, %v418
        %v442 = vsel %vm255, %v354, %v420
        %v443 = vsel %vm255, %v355, %v422
        %v444 = vsel %vm255, %v356, %v424
        %v445 = vsel %vm255, %v357, %v426
        %v446 = vsel %vm255, %v358, %v428
        %v447 = vsel %vm255, %v359, %v430
        %v448 = vsel %vm255, %v360, %v432
        %v449 = vrsqrt.pop %v441
        %v450 = vmul.f32 %v449, %v441
        %v451 = vmul.f32 %v450, %v449
        %v452 = vmul.f32 0.5, %v451
        %v453 = vsub.f32 1.5, %v452
        %v454 = vmul.f32 %v449, %v453
        %v455 = vmul.f32 %v441, %v454
        %vm456 = vcmp.eq.f32.partialorder %v441, inf
        %v457 = vsel %vm456, %v441, %v455
        %vm458 = vcmp.eq.f32.partialorder %v441, 0.0
        %v459 = vand.u32 %v441, 2147483648
        %v460 = vsel %vm458, %v459, %v457
        %v461 = vrsqrt.pop %v442
        %v462 = vmul.f32 %v461, %v442
        %v463 = vmul.f32 %v462, %v461
        %v464 = vmul.f32 0.5, %v463
        %v465 = vsub.f32 1.5, %v464
        %v466 = vmul.f32 %v461, %v465
        %v467 = vmul.f32 %v442, %v466
        %vm468 = vcmp.eq.f32.partialorder %v442, inf
        %v469 = vsel %vm468, %v442, %v467
        %vm470 = vcmp.eq.f32.partialorder %v442, 0.0
        %v471 = vand.u32 %v442, 2147483648
        %v472 = vsel %vm470, %v471, %v469
        %v473 = vrsqrt.pop %v443
        %v474 = vmul.f32 %v473, %v443
        %v475 = vmul.f32 %v474, %v473
        %v476 = vmul.f32 0.5, %v475
        %v477 = vsub.f32 1.5, %v476
        %v478 = vmul.f32 %v473, %v477
        %v479 = vmul.f32 %v443, %v478
        %vm480 = vcmp.eq.f32.partialorder %v443, inf
        %v481 = vsel %vm480, %v443, %v479
        %vm482 = vcmp.eq.f32.partialorder %v443, 0.0
        %v483 = vand.u32 %v443, 2147483648
        %v484 = vsel %vm482, %v483, %v481
        %v485 = vrsqrt.pop %v444
        %v486 = vmul.f32 %v485, %v444
        %v487 = vmul.f32 %v486, %v485
        %v488 = vmul.f32 0.5, %v487
        %v489 = vsub.f32 1.5, %v488
        %v490 = vmul.f32 %v485, %v489
        %v491 = vmul.f32 %v444, %v490
        %vm492 = vcmp.eq.f32.partialorder %v444, inf
        %v493 = vsel %vm492, %v444, %v491
        %vm494 = vcmp.eq.f32.partialorder %v444, 0.0
        %v495 = vand.u32 %v444, 2147483648
        %v496 = vsel %vm494, %v495, %v493
        %v497 = vrsqrt.pop %v445
        %v498 = vmul.f32 %v497, %v445
        %v499 = vmul.f32 %v498, %v497
        %v500 = vmul.f32 0.5, %v499
        %v501 = vsub.f32 1.5, %v500
        %v502 = vmul.f32 %v497, %v501
        %v503 = vmul.f32 %v445, %v502
        %vm504 = vcmp.eq.f32.partialorder %v445, inf
        %v505 = vsel %vm504, %v445, %v503
        %vm506 = vcmp.eq.f32.partialorder %v445, 0.0
        %v507 = vand.u32 %v445, 2147483648
        %v508 = vsel %vm506, %v507, %v505
        %v509 = vrsqrt.pop %v446
        %v510 = vmul.f32 %v509, %v446
        %v511 = vmul.f32 %v510, %v509
        %v512 = vmul.f32 0.5, %v511
        %v513 = vsub.f32 1.5, %v512
        %v514 = vmul.f32 %v509, %v513
        %v515 = vmul.f32 %v446, %v514
        %vm516 = vcmp.eq.f32.partialorder %v446, inf
        %v517 = vsel %vm516, %v446, %v515
        %vm518 = vcmp.eq.f32.partialorder %v446, 0.0
        %v519 = vand.u32 %v446, 2147483648
        %v520 = vsel %vm518, %v519, %v517
        %v521 = vrsqrt.pop %v447
        %v522 = vmul.f32 %v521, %v447
        %v523 = vmul.f32 %v522, %v521
        %v524 = vmul.f32 0.5, %v523
        %v525 = vsub.f32 1.5, %v524
        %v526 = vmul.f32 %v521, %v525
        %v527 = vmul.f32 %v447, %v526
        %vm528 = vcmp.eq.f32.partialorder %v447, inf
        %v529 = vsel %vm528, %v447, %v527
        %vm530 = vcmp.eq.f32.partialorder %v447, 0.0
        %v531 = vand.u32 %v447, 2147483648
        %v532 = vsel %vm530, %v531, %v529
        %v533 = vrsqrt.pop %v448
        %v534 = vmul.f32 %v533, %v448
        %v535 = vmul.f32 %v534, %v533
        %v536 = vmul.f32 0.5, %v535
        %v537 = vsub.f32 1.5, %v536
        %v538 = vmul.f32 %v533, %v537
        %v539 = vmul.f32 %v448, %v538
        %vm540 = vcmp.eq.f32.partialorder %v448, inf
        %v541 = vsel %vm540, %v448, %v539
        %vm542 = vcmp.eq.f32.partialorder %v448, 0.0
        %v543 = vand.u32 %v448, 2147483648
        %v544 = vsel %vm542, %v543, %v541
        %s545 = scalar_lea.vmem %s209, 64 [#allocation2]
        %v546 = vld [vmem:[%s545] sm:$0xff]
        %v547 = vld [vmem:[%s545 + $0x8] sm:$0xff]
        %v548 = vld [vmem:[%s545 + $0x10] sm:$0xff]
        %v549 = vld [vmem:[%s545 + $0x18] sm:$0xff]
        %v550 = vld [vmem:[%s545 + $0x20] sm:$0xff]
        %v551 = vld [vmem:[%s545 + $0x28] sm:$0xff]
        %v552 = vld [vmem:[%s545 + $0x30] sm:$0xff]
        %v553 = vld [vmem:[%s545 + $0x38] sm:$0xff]
        %v554 = vmul.f32 %v546, %v546
        %v555 = vmul.f32 %v547, %v547
        %v556 = vmul.f32 %v548, %v548
        %v557 = vmul.f32 %v549, %v549
        %v558 = vmul.f32 %v550, %v550
        %v559 = vmul.f32 %v551, %v551
        %v560 = vmul.f32 %v552, %v552
        %v561 = vmul.f32 %v553, %v553
        %562 = vrot.lane.b32.xlu0 %v554, 16
        %v563 = vpop.permute.xlu0 %562
        %v564 = vsel %vm272, %v563, %v554
        %565 = vrot.lane.b32.xlu0 %v555, 16
        %v566 = vpop.permute.xlu0 %565
        %v567 = vsel %vm272, %v566, %v555
        %568 = vrot.lane.b32.xlu0 %v556, 16
        %v569 = vpop.permute.xlu0 %568
        %v570 = vsel %vm272, %v569, %v556
        %571 = vrot.lane.b32.xlu0 %v557, 16
        %v572 = vpop.permute.xlu0 %571
        %v573 = vsel %vm272, %v572, %v557
        %574 = vrot.lane.b32.xlu0 %v558, 16
        %v575 = vpop.permute.xlu0 %574
        %v576 = vsel %vm272, %v575, %v558
        %577 = vrot.lane.b32.xlu0 %v559, 16
        %v578 = vpop.permute.xlu0 %577
        %v579 = vsel %vm272, %v578, %v559
        %580 = vrot.lane.b32.xlu0 %v560, 16
        %v581 = vpop.permute.xlu0 %580
        %v582 = vsel %vm272, %v581, %v560
        %583 = vrot.lane.b32.xlu0 %v561, 16
        %v584 = vpop.permute.xlu0 %583
        %v585 = vsel %vm272, %v584, %v561
        %586 = vrot.lane.b32.xlu0 %v564, 16
        %v587 = vpop.permute.xlu0 %586
        %588 = vrot.lane.b32.xlu0 %v567, 16
        %v589 = vpop.permute.xlu0 %588
        %590 = vrot.lane.b32.xlu0 %v570, 16
        %v591 = vpop.permute.xlu0 %590
        %592 = vrot.lane.b32.xlu0 %v573, 16
        %v593 = vpop.permute.xlu0 %592
        %594 = vrot.lane.b32.xlu0 %v576, 16
        %v595 = vpop.permute.xlu0 %594
        %596 = vrot.lane.b32.xlu0 %v579, 16
        %v597 = vpop.permute.xlu0 %596
        %598 = vrot.lane.b32.xlu0 %v582, 16
        %v599 = vpop.permute.xlu0 %598
        %600 = vrot.lane.b32.xlu0 %v585, 16
        %v601 = vpop.permute.xlu0 %600
        %v602 = vsel %vm272, %v587, %v554
        %v603 = vsel %vm272, %v589, %v555
        %v604 = vsel %vm272, %v591, %v556
        %v605 = vsel %vm272, %v593, %v557
        %v606 = vsel %vm272, %v595, %v558
        %v607 = vsel %vm272, %v597, %v559
        %v608 = vsel %vm272, %v599, %v560
        %v609 = vsel %vm272, %v601, %v561
        %618 = vrot.lane.b32.xlu0 %v602, 127
        %v619 = vpop.permute.xlu0 %618
        %620 = vrot.lane.b32.xlu0 %v603, 127
        %v621 = vpop.permute.xlu0 %620
        %622 = vrot.lane.b32.xlu0 %v604, 127
        %v623 = vpop.permute.xlu0 %622
        %624 = vrot.lane.b32.xlu0 %v605, 127
        %v625 = vpop.permute.xlu0 %624
        %626 = vrot.lane.b32.xlu0 %v606, 127
        %v627 = vpop.permute.xlu0 %626
        %628 = vrot.lane.b32.xlu0 %v607, 127
        %v629 = vpop.permute.xlu0 %628
        %630 = vrot.lane.b32.xlu0 %v608, 127
        %v631 = vpop.permute.xlu0 %630
        %632 = vrot.lane.b32.xlu0 %v609, 127
        %v633 = vpop.permute.xlu0 %632
        %v642 = vadd.f32 %v554, %v619
        %v643 = vadd.f32 %v555, %v621
        %v644 = vadd.f32 %v556, %v623
        %v645 = vadd.f32 %v557, %v625
        %v646 = vadd.f32 %v558, %v627
        %v647 = vadd.f32 %v559, %v629
        %v648 = vadd.f32 %v560, %v631
        %v649 = vadd.f32 %v561, %v633
        %650 = vrot.lane.b32.xlu0 %v642, 16
        %v651 = vpop.permute.xlu0 %650
        %v652 = vsel %vm272, %v651, %v642
        %653 = vrot.lane.b32.xlu0 %v643, 16
        %v654 = vpop.permute.xlu0 %653
        %v655 = vsel %vm272, %v654, %v643
        %656 = vrot.lane.b32.xlu0 %v644, 16
        %v657 = vpop.permute.xlu0 %656
        %v658 = vsel %vm272, %v657, %v644
        %659 = vrot.lane.b32.xlu0 %v645, 16
        %v660 = vpop.permute.xlu0 %659
        %v661 = vsel %vm272, %v660, %v645
        %662 = vrot.lane.b32.xlu0 %v646, 16
        %v663 = vpop.permute.xlu0 %662
        %v664 = vsel %vm272, %v663, %v646
        %665 = vrot.lane.b32.xlu0 %v647, 16
        %v666 = vpop.permute.xlu0 %665
        %v667 = vsel %vm272, %v666, %v647
        %668 = vrot.lane.b32.xlu0 %v648, 16
        %v669 = vpop.permute.xlu0 %668
        %v670 = vsel %vm272, %v669, %v648
        %671 = vrot.lane.b32.xlu0 %v649, 16
        %v672 = vpop.permute.xlu0 %671
        %v673 = vsel %vm272, %v672, %v649
        %674 = vrot.lane.b32.xlu0 %v652, 16
        %v675 = vpop.permute.xlu0 %674
        %676 = vrot.lane.b32.xlu0 %v655, 16
        %v677 = vpop.permute.xlu0 %676
        %678 = vrot.lane.b32.xlu0 %v658, 16
        %v679 = vpop.permute.xlu0 %678
        %680 = vrot.lane.b32.xlu0 %v661, 16
        %v681 = vpop.permute.xlu0 %680
        %682 = vrot.lane.b32.xlu0 %v664, 16
        %v683 = vpop.permute.xlu0 %682
        %684 = vrot.lane.b32.xlu0 %v667, 16
        %v685 = vpop.permute.xlu0 %684
        %686 = vrot.lane.b32.xlu0 %v670, 16
        %v687 = vpop.permute.xlu0 %686
        %688 = vrot.lane.b32.xlu0 %v673, 16
        %v689 = vpop.permute.xlu0 %688
        %v690 = vsel %vm272, %v675, %v642
        %v691 = vsel %vm272, %v677, %v643
        %v692 = vsel %vm272, %v679, %v644
        %v693 = vsel %vm272, %v681, %v645
        %v694 = vsel %vm272, %v683, %v646
        %v695 = vsel %vm272, %v685, %v647
        %v696 = vsel %vm272, %v687, %v648
        %v697 = vsel %vm272, %v689, %v649
        %706 = vrot.lane.b32.xlu0 %v690, 121
        %v707 = vpop.permute.xlu0 %706
        %708 = vrot.lane.b32.xlu0 %v691, 121
        %v709 = vpop.permute.xlu0 %708
        %710 = vrot.lane.b32.xlu0 %v692, 121
        %v711 = vpop.permute.xlu0 %710
        %712 = vrot.lane.b32.xlu0 %v693, 121
        %v713 = vpop.permute.xlu0 %712
        %714 = vrot.lane.b32.xlu0 %v694, 121
        %v715 = vpop.permute.xlu0 %714
        %716 = vrot.lane.b32.xlu0 %v695, 121
        %v717 = vpop.permute.xlu0 %716
        %718 = vrot.lane.b32.xlu0 %v696, 121
        %v719 = vpop.permute.xlu0 %718
        %720 = vrot.lane.b32.xlu0 %v697, 121
        %v721 = vpop.permute.xlu0 %720
        %v730 = vsel %vm255, %v642, %v707
        %v731 = vsel %vm255, %v643, %v709
        %v732 = vsel %vm255, %v644, %v711
        %v733 = vsel %vm255, %v645, %v713
        %v734 = vsel %vm255, %v646, %v715
        %v735 = vsel %vm255, %v647, %v717
        %v736 = vsel %vm255, %v648, %v719
        %v737 = vsel %vm255, %v649, %v721
        %v738 = vrsqrt.pop %v730
        %v739 = vmul.f32 %v738, %v730
        %v740 = vmul.f32 %v739, %v738
        %v741 = vmul.f32 0.5, %v740
        %v742 = vsub.f32 1.5, %v741
        %v743 = vmul.f32 %v738, %v742
        %v744 = vmul.f32 %v730, %v743
        %vm745 = vcmp.eq.f32.partialorder %v730, inf
        %v746 = vsel %vm745, %v730, %v744
        %vm747 = vcmp.eq.f32.partialorder %v730, 0.0
        %v748 = vand.u32 %v730, 2147483648
        %v749 = vsel %vm747, %v748, %v746
        %v750 = vrsqrt.pop %v731
        %v751 = vmul.f32 %v750, %v731
        %v752 = vmul.f32 %v751, %v750
        %v753 = vmul.f32 0.5, %v752
        %v754 = vsub.f32 1.5, %v753
        %v755 = vmul.f32 %v750, %v754
        %v756 = vmul.f32 %v731, %v755
        %vm757 = vcmp.eq.f32.partialorder %v731, inf
        %v758 = vsel %vm757, %v731, %v756
        %vm759 = vcmp.eq.f32.partialorder %v731, 0.0
        %v760 = vand.u32 %v731, 2147483648
        %v761 = vsel %vm759, %v760, %v758
        %v762 = vrsqrt.pop %v732
        %v763 = vmul.f32 %v762, %v732
        %v764 = vmul.f32 %v763, %v762
        %v765 = vmul.f32 0.5, %v764
        %v766 = vsub.f32 1.5, %v765
        %v767 = vmul.f32 %v762, %v766
        %v768 = vmul.f32 %v732, %v767
        %vm769 = vcmp.eq.f32.partialorder %v732, inf
        %v770 = vsel %vm769, %v732, %v768
        %vm771 = vcmp.eq.f32.partialorder %v732, 0.0
        %v772 = vand.u32 %v732, 2147483648
        %v773 = vsel %vm771, %v772, %v770
        %v774 = vrsqrt.pop %v733
        %v775 = vmul.f32 %v774, %v733
        %v776 = vmul.f32 %v775, %v774
        %v777 = vmul.f32 0.5, %v776
        %v778 = vsub.f32 1.5, %v777
        %v779 = vmul.f32 %v774, %v778
        %v780 = vmul.f32 %v733, %v779
        %vm781 = vcmp.eq.f32.partialorder %v733, inf
        %v782 = vsel %vm781, %v733, %v780
        %vm783 = vcmp.eq.f32.partialorder %v733, 0.0
        %v784 = vand.u32 %v733, 2147483648
        %v785 = vsel %vm783, %v784, %v782
        %v786 = vrsqrt.pop %v734
        %v787 = vmul.f32 %v786, %v734
        %v788 = vmul.f32 %v787, %v786
        %v789 = vmul.f32 0.5, %v788
        %v790 = vsub.f32 1.5, %v789
        %v791 = vmul.f32 %v786, %v790
        %v792 = vmul.f32 %v734, %v791
        %vm793 = vcmp.eq.f32.partialorder %v734, inf
        %v794 = vsel %vm793, %v734, %v792
        %vm795 = vcmp.eq.f32.partialorder %v734, 0.0
        %v796 = vand.u32 %v734, 2147483648
        %v797 = vsel %vm795, %v796, %v794
        %v798 = vrsqrt.pop %v735
        %v799 = vmul.f32 %v798, %v735
        %v800 = vmul.f32 %v799, %v798
        %v801 = vmul.f32 0.5, %v800
        %v802 = vsub.f32 1.5, %v801
        %v803 = vmul.f32 %v798, %v802
        %v804 = vmul.f32 %v735, %v803
        %vm805 = vcmp.eq.f32.partialorder %v735, inf
        %v806 = vsel %vm805, %v735, %v804
        %vm807 = vcmp.eq.f32.partialorder %v735, 0.0
        %v808 = vand.u32 %v735, 2147483648
        %v809 = vsel %vm807, %v808, %v806
        %v810 = vrsqrt.pop %v736
        %v811 = vmul.f32 %v810, %v736
        %v812 = vmul.f32 %v811, %v810
        %v813 = vmul.f32 0.5, %v812
        %v814 = vsub.f32 1.5, %v813
        %v815 = vmul.f32 %v810, %v814
        %v816 = vmul.f32 %v736, %v815
        %vm817 = vcmp.eq.f32.partialorder %v736, inf
        %v818 = vsel %vm817, %v736, %v816
        %vm819 = vcmp.eq.f32.partialorder %v736, 0.0
        %v820 = vand.u32 %v736, 2147483648
        %v821 = vsel %vm819, %v820, %v818
        %v822 = vrsqrt.pop %v737
        %v823 = vmul.f32 %v822, %v737
        %v824 = vmul.f32 %v823, %v822
        %v825 = vmul.f32 0.5, %v824
        %v826 = vsub.f32 1.5, %v825
        %v827 = vmul.f32 %v822, %v826
        %v828 = vmul.f32 %v737, %v827
        %vm829 = vcmp.eq.f32.partialorder %v737, inf
        %v830 = vsel %vm829, %v737, %v828
        %vm831 = vcmp.eq.f32.partialorder %v737, 0.0
        %v832 = vand.u32 %v737, 2147483648
        %v833 = vsel %vm831, %v832, %v830
        %v834 = vadd.f32 %v460, %v749
        %v835 = vadd.f32 %v472, %v761
        %v836 = vadd.f32 %v484, %v773
        %v837 = vadd.f32 %v496, %v785
        %v838 = vadd.f32 %v508, %v797
        %v839 = vadd.f32 %v520, %v809
        %v840 = vadd.f32 %v532, %v821
        %v841 = vadd.f32 %v544, %v833
        %v842 = vmul.f32 %v834, 0.5
        %v843 = vmul.f32 %v835, 0.5
        %v844 = vmul.f32 %v836, 0.5
        %v845 = vmul.f32 %v837, 0.5
        %v846 = vmul.f32 %v838, 0.5
        %v847 = vmul.f32 %v839, 0.5
        %v848 = vmul.f32 %v840, 0.5
        %v849 = vmul.f32 %v841, 0.5
        %vm850 = vcmask 64512
        %851 = vst.msk [vmem:[%s239] sm:$0xff] %vm850, %v842
        %852 = vst.msk [vmem:[%s239 + $0x8] sm:$0xff] %vm850, %v843
        %853 = vst.msk [vmem:[%s239 + $0x10] sm:$0xff] %vm850, %v844
        %854 = vst.msk [vmem:[%s239 + $0x18] sm:$0xff] %vm850, %v845
        %855 = vst.msk [vmem:[%s239 + $0x20] sm:$0xff] %vm850, %v846
        %856 = vst.msk [vmem:[%s239 + $0x28] sm:$0xff] %vm850, %v847
        %857 = vst.msk [vmem:[%s239 + $0x30] sm:$0xff] %vm850, %v848
        %858 = vst.msk [vmem:[%s239 + $0x38] sm:$0xff] %vm850, %v849
        %s859 = smul.u32 8, %s17
        %p860 = scmp.lt.s32.totalorder %s16, 1
        %s861 = scalar_select %p860, %s16, 1
        %p862 = scmp.lt.s32.totalorder %s859, 15
        %s863 = scalar_select %p862, %s859, 15
        %s864 = smul.addr %s861, 16
        %s865 = sadd.s32 %s863, %s864
        %s866 = smul.addr %s865, 8
        %s867 = scalar_lea.vmem %s1, %s866
        // Predicated region
        $region63: #{tpu_custom_call.1} parent=57 // pred_check
          %p868 = pneg %p72
        $region64: #{tpu_custom_call.1} parent=57 // pred_check_branch
          %870 = sbr.rel (%p868) target = $region66
        $region65: #{tpu_custom_call.1} parent=57 // pred_region
          %s871 = smul.u32 8, %s17
        $region66: #{tpu_custom_call.1} parent=57 // pred_fallthru
          _
      $region58: #{tpu_custom_call.1} parent=5 // pred_fallthru
        _
      %p872 = scmp.le.s32.totalorder 2, %s7
      // Predicated region
      $region67: #{tpu_custom_call.1} parent=5 // pred_check
        %p873 = pneg %p872
      $region68: #{tpu_custom_call.1} parent=5 // pred_check_branch
        %875 = sbr.rel (%p873) target = $region70
      $region69: #{tpu_custom_call.1} parent=5 // pred_region
        %s876 = ssub.s32 %s7, 2
        // Predicated region
        $region71: #{tpu_custom_call.1} parent=69 // pred_check
          %p877 = pneg %p78
        $region72: #{tpu_custom_call.1} parent=69 // pred_check_branch
          %879 = sbr.rel (%p877) target = $region74
        $region73: #{tpu_custom_call.1} parent=69 // pred_region
          %s880 = smul.u32 8, %s19
          %p881 = scmp.lt.s32.totalorder %s18, 1
          %s882 = scalar_select %p881, %s18, 1
          %p883 = scmp.lt.s32.totalorder %s880, 15
          %s884 = scalar_select %p883, %s880, 15
          %s885 = smul.addr %s882, 16
          %s886 = sadd.s32 %s884, %s885
          %s887 = smul.addr %s886, 8
          %s888 = scalar_lea.vmem %s1, %s887
        $region74: #{tpu_custom_call.1} parent=69 // pred_fallthru
          _
      $region70: #{tpu_custom_call.1} parent=5 // pred_fallthru
        _
    $region6: #{tpu_custom_call.1} parent=1 // loop_footer
      %s11 = sadd.s32 1, %s7
    $region7: #{tpu_custom_call.1} parent=1 // loop_footer_branch
      %6 = sbr.rel target = $region3
    $region8: #{tpu_custom_call.1} parent=1 // loop_exit
      _

</llo_original>
